<compile_context>
chip_gen: v7x
topology: tpu7x:2x2x1
jax: 0.10.0
libtpu: 0.0.40
codegen_flags: <defaults>
</compile_context>

<pallas_src>
import functools

import jax
import jax.numpy as jnp
from jax.experimental import pallas as pl
from jax.experimental.pallas import tpu as pltpu

_LANE = 128  # last-two-dims tiling unit (sublane x lane = 8 x 128)


# ---------------------------------------------------------------------------
# Small helpers
# ---------------------------------------------------------------------------
def _round_up(n, m):
    return ((n + m - 1) // m) * m


def _make_spec(shape, index_map, *, buffers=None):
    """BlockSpec, optionally with an explicit buffer count; falls back to the
    default pipelining if the installed jax lacks `pipeline_mode`."""
    if buffers is not None and hasattr(pl, "Buffered"):
        try:
            return pl.BlockSpec(shape, index_map,
                                pipeline_mode=pl.Buffered(buffers))
        except TypeError:
            pass
    return pl.BlockSpec(shape, index_map)


def _vmem_caps():
    """Per-generation VMEM budgets (bytes)."""
    try:
        phys = int(pltpu.get_tpu_info().vmem_capacity_bytes)
    except Exception:
        phys = 64 << 20  # be conservative (v7x-sized) if the query fails
    if phys >= (128 << 20):  # v5e / v6e: 128 MiB physical VMEM per core
        return {"vmem_cap": 104 << 20, "resident_budget": 72 << 20,
                "fuse_budget": 40 << 20}
    # v7x: 64 MiB physical VMEM, 2 TensorCores -> keep the fused (1-TC) path small.
    return {"vmem_cap": 56 << 20, "resident_budget": 24 << 20,
            "fuse_budget": 16 << 20}


def _split_bf16(x_f32):
    """Split f32 into bf16 hi/lo parts so hi+lo ~= x to ~16 mantissa bits."""
    hi = x_f32.astype(jnp.bfloat16)
    lo = (x_f32 - hi.astype(jnp.float32)).astype(jnp.bfloat16)
    return hi, lo


# ---------------------------------------------------------------------------
# Fused kernel: all propagation layers in one single-step pallas_call (small N)
# ---------------------------------------------------------------------------
def _fused_kernel(adj_ref, x_ref, o_ref, *, num_layers):
    # adj_ref: (N, N) bf16, already scaled by 0.5 (entries are exact).  x is
    # kept in f32; per layer it is split into bf16 hi/lo and pushed through
    # the MXU twice (full bf16 rate, f32 accumulation), which keeps ~f32
    # numerics without the multi-pass f32 MXU path.
    x = x_ref[...]
    for _ in range(num_layers):  # static & small -> unrolled
        hi = x.astype(jnp.bfloat16)
        lo = (x - hi.astype(jnp.float32)).astype(jnp.bfloat16)
        x = (jnp.dot(adj_ref[...], hi, preferred_element_type=jnp.float32)
             + jnp.dot(adj_ref[...], lo, preferred_element_type=jnp.float32))
    o_ref[...] = x


def lightgcn_propagate_fused(adj_bf16, x, *, num_layers, vmem_limit_bytes):
    """All `num_layers` propagation layers fused in one VMEM-resident kernel."""
    N, D = x.shape
    assert adj_bf16.shape == (N, N)
    kernel = functools.partial(_fused_kernel, num_layers=num_layers)
    return pl.pallas_call(
        kernel,
        out_shape=jax.ShapeDtypeStruct((N, D), jnp.float32),
        grid_spec=pltpu.PrefetchScalarGridSpec(
            num_scalar_prefetch=0,
            grid=(1,),
            in_specs=[
                _make_spec((N, N), lambda i: (0, 0), buffers=1),  # adjacency bf16
                _make_spec((N, D), lambda i: (0, 0), buffers=1),  # embeddings f32
            ],
            out_specs=pl.BlockSpec((N, D), lambda i: (0, 0)),
        ),
        compiler_params=pltpu.CompilerParams(
            dimension_semantics=("arbitrary",),
            vmem_limit_bytes=int(vmem_limit_bytes),
        ),
    )(adj_bf16, x.astype(jnp.float32))


# ---------------------------------------------------------------------------
# General tiled path: one propagation layer, 0.5*(A+A^T) already folded in.
# ---------------------------------------------------------------------------
def _tiled_kernel_x_resident(adj_ref, xhi_ref, xlo_ref, o_ref, *, tk):
    # x hi/lo (bf16) are fully resident in VMEM; slice the contraction chunk
    # in-kernel.  Output block is resident across k -> accumulate in place.
    k = pl.program_id(1)
    start = pl.multiple_of(k * tk, tk)
    a = adj_ref[...]                                           # (tm, tk) bf16
    part = (jnp.dot(a, xhi_ref[pl.ds(start, tk), :],
                    preferred_element_type=jnp.float32)
            + jnp.dot(a, xlo_ref[pl.ds(start, tk), :],
                      preferred_element_type=jnp.float32))

    @pl.when(k == 0)
    def _():
        o_ref[...] = part

    @pl.when(k != 0)
    def _():
        o_ref[...] += part


def _tiled_kernel_x_streamed(adj_ref, xhi_ref, xlo_ref, o_ref):
    k = pl.program_id(1)
    a = adj_ref[...]
    part = (jnp.dot(a, xhi_ref[...], preferred_element_type=jnp.float32)
            + jnp.dot(a, xlo_ref[...], preferred_element_type=jnp.float32))

    @pl.when(k == 0)
    def _():
        o_ref[...] = part

    @pl.when(k != 0)
    def _():
        o_ref[...] += part


def _pick_tile(n, preferred, *, min_blocks=1):
    """Largest candidate tile that divides n (n is a multiple of 128 here),
    optionally capped so the axis splits into >= min_blocks blocks (megacore)."""
    cap = preferred
    if min_blocks > 1 and n >= min_blocks * _LANE:
        cap = min(cap, n // min_blocks)
    for t in (2048, 1024, 512, 256, 128):
        if t <= cap and n % t == 0:
            return t
    return n  # only reachable for tiny n; full extent is always legal


def propagate_tiled(adj, x, *, tm=None, tk=None):
    """One LightGCN propagation layer: (0.5*(A+A^T)) @ x, tiled over HBM."""
    N, D = x.shape
    assert adj.shape == (N, N)
    caps = _vmem_caps()

    # Pad N to a multiple of 128 (zero rows/cols are harmless for this matmul)
    # so tiles stay (8,128)-aligned for any graph size.
    Np = _round_up(N, _LANE)
    pad = Np - N
    if pad:
        adj = jnp.pad(adj, ((0, pad), (0, pad)))
        x = jnp.pad(x, ((0, pad), (0, 0)))

    adj = adj.astype(jnp.bfloat16)
    x_hi, x_lo = _split_bf16(x.astype(jnp.float32))

    # Keep the whole (hi+lo) embedding matrix resident in VMEM when it fits
    # comfortably -> x is read from HBM once instead of Np/tm times.
    x_resident_bytes = 2 * Np * D * 2                     # hi + lo, 1 buffer
    x_resident = 2 * x_resident_bytes <= caps["resident_budget"]

    if x_resident:
        tm = _pick_tile(Np, tm or 1024, min_blocks=2)      # >=2 row blocks (2 TCs)
        tk = _pick_tile(Np, tk or 512)
    else:
        # Streamed x: tall tiles cut x re-reads (x is re-read Np/tm times).
        tm = _pick_tile(Np, tm or 2048, min_blocks=2)
        tk = _pick_tile(Np, tk or 256)
    grid = (Np // tm, Np // tk)

    if x_resident:
        kernel = functools.partial(_tiled_kernel_x_resident, tk=tk)
        x_specs = [_make_spec((Np, D), lambda i, k: (0, 0), buffers=1),
                   _make_spec((Np, D), lambda i, k: (0, 0), buffers=1)]
        x_bytes = 2 * x_resident_bytes                     # conservative (2 buf)
    else:
        kernel = _tiled_kernel_x_streamed
        x_specs = [pl.BlockSpec((tk, D), lambda i, k: (k, 0)),
                   pl.BlockSpec((tk, D), lambda i, k: (k, 0))]
        x_bytes = 2 * 2 * tk * D * 2

    # Double-buffered bf16 adjacency tiles + x + resident f32 output block.
    vmem_est = 2 * tm * tk * 2 + x_bytes + 2 * tm * D * 4
    vmem_limit = int(min(max(vmem_est + (8 << 20), 32 << 20), caps["vmem_cap"]))

    out = pl.pallas_call(
        kernel,
        out_shape=jax.ShapeDtypeStruct((Np, D), jnp.float32),
        grid_spec=pltpu.PrefetchScalarGridSpec(
            num_scalar_prefetch=0,
            grid=grid,
            in_specs=[pl.BlockSpec((tm, tk), lambda i, k: (i, k))] + x_specs,
            out_specs=pl.BlockSpec((tm, D), lambda i, k: (i, 0)),
        ),
        compiler_params=pltpu.CompilerParams(
            dimension_semantics=("parallel", "arbitrary"),
            vmem_limit_bytes=vmem_limit,
        ),
    )(adj, x_hi, x_lo)
    return out[:N] if pad else out


# ---------------------------------------------------------------------------
# Glue: adjacency construction, forward, pure-JAX reference.
# ---------------------------------------------------------------------------
def build_adjacency(edge_index, num_nodes, *, padded_to=None):
    """Dense symmetrized, pre-scaled adjacency M = 0.5*(A + A^T) via a single
    scatter (no N^2 transpose materialization)."""
    n = padded_to if padded_to is not None else num_nodes
    row, col = edge_index[0], edge_index[1]
    src = jnp.concatenate([row, col])
    dst = jnp.concatenate([col, row])
    return jnp.zeros((n, n), jnp.float32).at[src, dst].add(0.5)


def _check_bf16_exact(m_f32):
    """Eagerly verify the pre-scaled adjacency is exactly representable in
    bf16 (edge multiplicities small); skipped when tracing under jit."""
    try:
        exact = bool(jnp.all(
            m_f32.astype(jnp.bfloat16).astype(jnp.float32) == m_f32))
    except Exception:
        return
    if not exact:
        raise ValueError(
            "Adjacency entries (0.5 * edge multiplicity) are not exactly "
            "representable in bf16; reduce duplicate-edge multiplicity "
            "(<= 255 per symmetric pair) or keep the adjacency in f32.")


def lightgcn_forward(user_emb, item_emb, edge_index, num_layers=2):
    """Full LightGCN.forward: concat embeddings, propagate `num_layers` times."""
    embeddings = jnp.concatenate([user_emb, item_emb], axis=0).astype(jnp.float32)
    N, D = embeddings.shape
    Np = _round_up(N, _LANE)
    caps = _vmem_caps()

    # bf16 adjacency halves the dominant HBM stream and feeds the MXU at full
    # bf16 rate; values are exact half-integers for realistic multiplicities.
    adj_f32 = build_adjacency(edge_index, N, padded_to=Np)
    _check_bf16_exact(adj_f32)
    adj = adj_f32.astype(jnp.bfloat16)
    x = jnp.pad(embeddings, ((0, Np - N), (0, 0))) if Np != N else embeddings

    # If the whole problem fits easily in VMEM, fuse every layer into a single
    # one-step kernel (no per-layer launches / adjacency re-streams).  Kept
    # small on v7x: the grid=(1,) path only uses one of the two TensorCores.
    fused_est = 2 * Np * Np * 2 + 12 * Np * D * 4
    if fused_est <= caps["fuse_budget"]:
        vmem_limit = min(max(fused_est + (8 << 20), 32 << 20), caps["vmem_cap"])
        out = lightgcn_propagate_fused(adj, x, num_layers=num_layers,
                                       vmem_limit_bytes=vmem_limit)
    else:
        # TODO(synk): donate the (N, D) embedding buffer across layers via
        # input_output_aliases (currently skipped: bf16 hi/lo in, f32 out).
        out = x
        for _ in range(num_layers):
            out = propagate_tiled(adj, out)
    return out[:N] if Np != N else out


def _xavier_uniform(key, num_rows, num_cols):
    # nn.init.xavier_uniform_ on an (num_rows, num_cols) weight.
    bound = (6.0 / (num_rows + num_cols)) ** 0.5
    return jax.random.uniform(key, (num_rows, num_cols), jnp.float32,
                              minval=-bound, maxval=bound)


def _ref_propagate(edge_index, x):
    # Pure-JAX reference with scatter-add semantics.
    row, col = edge_index[0], edge_index[1]
    x_agg = jnp.zeros_like(x)
    x_agg = x_agg.at[row].add(x[col])
    x_agg = x_agg.at[col].add(x[row])
    return x_agg / 2.0


if __name__ == "__main__":
    num_users, num_items, embedding_dim = 96, 160, 128
    N = num_users + num_items  # 256
    num_edges = 512

    key = jax.random.PRNGKey(0)
    k_user, k_item, k_edges = jax.random.split(key, 3)

    user_emb = _xavier_uniform(k_user, num_users, embedding_dim)
    item_emb = _xavier_uniform(k_item, num_items, embedding_dim)
    edge_index = jax.random.randint(k_edges, (2, num_edges), 0, N, dtype=jnp.int32)

    # Pure-JAX reference of the forward pass (f32 scatter-add semantics).
    ref = jnp.concatenate([user_emb, item_emb], axis=0)
    for _ in range(2):
        ref = _ref_propagate(edge_index, ref)

    # Fused (single-kernel) path — what lightgcn_forward picks at this size.
    out = lightgcn_forward(user_emb, item_emb, edge_index, num_layers=2)
    out = jax.block_until_ready(out)
    assert out.shape == (N, embedding_dim)
    # Split-bf16 x => ~1e-5-level agreement with the f32 reference.
    assert jnp.allclose(out, ref, rtol=1e-4, atol=5e-5), "fused path mismatch"

    # Also exercise the general tiled path (layer-by-layer) for coverage.
    adj_f32 = build_adjacency(edge_index, N)
    x = jnp.concatenate([user_emb, item_emb], axis=0)
    for _ in range(2):
        x = propagate_tiled(adj_f32, x)
    x = jax.block_until_ready(x)
    assert jnp.allclose(x, ref, rtol=1e-4, atol=5e-5), "tiled path mismatch"

    print("KERNEL_OK")
</pallas_src>

<mosaic_0001>
module attributes {stable_mosaic.version = 11 : i64} {
  func.func @_fused_kernel(%arg0: i32, %arg1: memref<256x256xbf16, #tpu.memory_space<vmem>>, %arg2: memref<256x128xf32, #tpu.memory_space<vmem>>, %arg3: memref<256x128xf32, #tpu.memory_space<vmem>>) attributes {dimension_semantics = [#tpu.dimension_semantics<arbitrary>], iteration_bounds = array<i64: 1>, scalar_prefetch = 0 : i64, scratch_operands = 0 : i64, tpu.core_type = #tpu.core_type<tc>, window_params = [{pipeline_mode = #tpu.pipeline_mode<synchronous>, transform_indices = @transform_0, window_bounds = array<i64: 256, 256>}, {pipeline_mode = #tpu.pipeline_mode<synchronous>, transform_indices = @transform_1, window_bounds = array<i64: 256, 128>}, {pipeline_mode = #tpu.pipeline_mode<synchronous>, transform_indices = @transform_2, window_bounds = array<i64: 256, 128>}]} {
    %c0 = arith.constant 0 : index
    %c0_0 = arith.constant 0 : index
    %0 = vector.load %arg2[%c0, %c0_0] : memref<256x128xf32, #tpu.memory_space<vmem>>, vector<256x128xf32>
    %1 = arith.truncf %0 : vector<256x128xf32> to vector<256x128xbf16>
    %2 = arith.extf %1 : vector<256x128xbf16> to vector<256x128xf32>
    %3 = arith.subf %0, %2 : vector<256x128xf32>
    %4 = arith.truncf %3 : vector<256x128xf32> to vector<256x128xbf16>
    %c0_1 = arith.constant 0 : index
    %c0_2 = arith.constant 0 : index
    %5 = vector.load %arg1[%c0_1, %c0_2] : memref<256x256xbf16, #tpu.memory_space<vmem>>, vector<256x256xbf16>
    %cst = arith.constant dense<0.000000e+00> : vector<256x128xf32>
    %6 = tpu.matmul %5, %1, %cst {dimension_numbers = #tpu.dot_dimension_numbers<[1], [0], [0], [1], [0, 0, 1, 1], [], []>} : vector<256x256xbf16>, vector<256x128xbf16>, vector<256x128xf32> -> vector<256x128xf32>
    %c0_3 = arith.constant 0 : index
    %c0_4 = arith.constant 0 : index
    %7 = vector.load %arg1[%c0_3, %c0_4] : memref<256x256xbf16, #tpu.memory_space<vmem>>, vector<256x256xbf16>
    %cst_5 = arith.constant dense<0.000000e+00> : vector<256x128xf32>
    %8 = tpu.matmul %7, %4, %cst_5 {dimension_numbers = #tpu.dot_dimension_numbers<[1], [0], [0], [1], [0, 0, 1, 1], [], []>} : vector<256x256xbf16>, vector<256x128xbf16>, vector<256x128xf32> -> vector<256x128xf32>
    %9 = arith.addf %6, %8 : vector<256x128xf32>
    %10 = arith.truncf %9 : vector<256x128xf32> to vector<256x128xbf16>
    %11 = arith.extf %10 : vector<256x128xbf16> to vector<256x128xf32>
    %12 = arith.subf %9, %11 : vector<256x128xf32>
    %13 = arith.truncf %12 : vector<256x128xf32> to vector<256x128xbf16>
    %c0_6 = arith.constant 0 : index
    %c0_7 = arith.constant 0 : index
    %14 = vector.load %arg1[%c0_6, %c0_7] : memref<256x256xbf16, #tpu.memory_space<vmem>>, vector<256x256xbf16>
    %cst_8 = arith.constant dense<0.000000e+00> : vector<256x128xf32>
    %15 = tpu.matmul %14, %10, %cst_8 {dimension_numbers = #tpu.dot_dimension_numbers<[1], [0], [0], [1], [0, 0, 1, 1], [], []>} : vector<256x256xbf16>, vector<256x128xbf16>, vector<256x128xf32> -> vector<256x128xf32>
    %c0_9 = arith.constant 0 : index
    %c0_10 = arith.constant 0 : index
    %16 = vector.load %arg1[%c0_9, %c0_10] : memref<256x256xbf16, #tpu.memory_space<vmem>>, vector<256x256xbf16>
    %cst_11 = arith.constant dense<0.000000e+00> : vector<256x128xf32>
    %17 = tpu.matmul %16, %13, %cst_11 {dimension_numbers = #tpu.dot_dimension_numbers<[1], [0], [0], [1], [0, 0, 1, 1], [], []>} : vector<256x256xbf16>, vector<256x128xbf16>, vector<256x128xf32> -> vector<256x128xf32>
    %18 = arith.addf %15, %17 : vector<256x128xf32>
    %c0_12 = arith.constant 0 : index
    %c0_13 = arith.constant 0 : index
    %19 = vector.load %arg3[%c0_12, %c0_13] : memref<256x128xf32, #tpu.memory_space<vmem>>, vector<256x128xf32>
    tpu.vector_store %arg3[%c0_12, %c0_13], %18 {strides = array<i32>} : memref<256x128xf32, #tpu.memory_space<vmem>>, vector<256x128xf32>,
    return
  }
  func.func @transform_0(%arg0: i32) -> (i32, i32) {
    %c0_i32 = arith.constant 0 : i32
    %c0_i32_0 = arith.constant 0 : i32
    %c0_i32_1 = arith.constant 0 : i32
    return %c0_i32, %c0_i32_0 : i32, i32
  }
  func.func @transform_1(%arg0: i32) -> (i32, i32) {
    %c0_i32 = arith.constant 0 : i32
    %c0_i32_0 = arith.constant 0 : i32
    %c0_i32_1 = arith.constant 0 : i32
    return %c0_i32, %c0_i32_0 : i32, i32
  }
  func.func @transform_2(%arg0: i32) -> (i32, i32) {
    %c0_i32 = arith.constant 0 : i32
    %c0_i32_0 = arith.constant 0 : i32
    %c0_i32_1 = arith.constant 0 : i32
    return %c0_i32, %c0_i32_0 : i32, i32
  }
}

</mosaic_0001>

<llo_original>
// kernel: tpu_custom_call.1
$region0: #{tpu_custom_call.1}
  #allocation0 [shape = 'u32[]', space=smem, size = 0x4, offset = 0x4, fixed_abs, tag = 'smem constant byte address 0x4 - core index']
  #allocation1 [shape = 'u32[144,128]{1,0:T(1,128)}', space=vmem, size = 0x12000, scoped, tag = 'internal scratch']
  %s0 = inlined_call_operand.hbm [shape: bf16[256,256], index: 0, kind: input, shape index: {}]
  %s1 = inlined_call_operand.hbm [shape: f32[256,128], index: 1, kind: input, shape index: {}]
  %s2 = inlined_call_operand.hbm [shape: f32[256,128], index: 2, kind: output, shape index: {}]
  %s3 = sld [smem:[#allocation0]]
  $region26: #{tpu_custom_call.1} parent=0
    _
  %s5 = ssub.s32 1, %s3
  %s6 = scalar_select 0, %s5, %s3
  $region1: #{tpu_custom_call.1} parent=0
    #allocation2 [shape = 'u8[131072]{0}', space=vmem, size = 0x20000, scoped, tag = 'input window, operand 0, single buffered']
    #allocation3 [shape = 's32[1]{0}', space=sflag, size = 0x4, scoped, tag = 'scoped memory for tpu_custom_call.1']
    #allocation4 [shape = 's32[1]{0}', space=sflag, size = 0x4, scoped, tag = 'scoped memory for tpu_custom_call.1']
    #allocation5 [shape = 'u8[131072]{0}', space=vmem, size = 0x20000, scoped, tag = 'input window, operand 1, single buffered']
    #allocation6 [shape = 's32[1]{0}', space=sflag, size = 0x4, scoped, tag = 'scoped memory for tpu_custom_call.1']
    #allocation7 [shape = 'u8[131072]{0}', space=vmem, size = 0x20000, scoped, tag = 'output window, operand 0, single buffered']
    %7 = vsyncpa [#allocation3], 0
    %8 = vsyncpa [#allocation6], 0
    %9 = vsyncpa [#allocation4], 0
    // Predicated region
    $region2: #{tpu_custom_call.1} parent=1 // pred_check
      _
    $region3: #{tpu_custom_call.1} parent=1 // pred_check_branch
      %11 = sbr.rel (0) target = $region5
    $region4: #{tpu_custom_call.1} parent=1 // pred_region
      %s13 = ssub.s32 4096, 4096
      %14 = vsyncadd [#allocation3], %s13
      %s15 = sshll.u32 [#allocation2], 4
      %s16 = int_to_ptr.vmem [resolvable:$true] %s15
      %21 = dma.hbm_to_vmem [thread:$0]  %s0, 4096, %s16, [#allocation3], 128, 128, 8
    $region5: #{tpu_custom_call.1} parent=1 // pred_fallthru
      _
    // Predicated region
    $region6: #{tpu_custom_call.1} parent=1 // pred_check
      _
    $region7: #{tpu_custom_call.1} parent=1 // pred_check_branch
      %23 = sbr.rel (0) target = $region9
    $region8: #{tpu_custom_call.1} parent=1 // pred_region
      %s25 = ssub.s32 4096, 4096
      %26 = vsyncadd [#allocation6], %s25
      %s27 = sshll.u32 [#allocation5], 4
      %s28 = int_to_ptr.vmem [resolvable:$true] %s27
      %33 = dma.hbm_to_vmem [thread:$0]  %s1, 4096, %s28, [#allocation6], 128, 128, 8
    $region9: #{tpu_custom_call.1} parent=1 // pred_fallthru
      _
    // Predicated region
    $region10: #{tpu_custom_call.1} parent=1 // pred_check
      _
    $region11: #{tpu_custom_call.1} parent=1 // pred_check_branch
      %35 = sbr.rel (0) target = $region13
    $region12: #{tpu_custom_call.1} parent=1 // pred_region
      %36 = dma.done [#allocation3], 4096
    $region13: #{tpu_custom_call.1} parent=1 // pred_fallthru
      _
    // Predicated region
    $region14: #{tpu_custom_call.1} parent=1 // pred_check
      _
    $region15: #{tpu_custom_call.1} parent=1 // pred_check_branch
      %38 = sbr.rel (0) target = $region17
    $region16: #{tpu_custom_call.1} parent=1 // pred_region
      %39 = dma.done [#allocation6], 4096
    $region17: #{tpu_custom_call.1} parent=1 // pred_fallthru
      _
    %v41 = vld [vmem:[#allocation5] sm:$0xff]
    %v42 = vld [vmem:[#allocation5 + $0x8] sm:$0xff]
    %v43 = vld [vmem:[#allocation5 + $0x10] sm:$0xff]
    %v44 = vld [vmem:[#allocation5 + $0x18] sm:$0xff]
    %v45 = vld [vmem:[#allocation5 + $0x20] sm:$0xff]
    %v46 = vld [vmem:[#allocation5 + $0x28] sm:$0xff]
    %v47 = vld [vmem:[#allocation5 + $0x30] sm:$0xff]
    %v48 = vld [vmem:[#allocation5 + $0x38] sm:$0xff]
    %v49 = vld [vmem:[#allocation5 + $0x40] sm:$0xff]
    %v50 = vld [vmem:[#allocation5 + $0x48] sm:$0xff]
    %v51 = vld [vmem:[#allocation5 + $0x50] sm:$0xff]
    %v52 = vld [vmem:[#allocation5 + $0x58] sm:$0xff]
    %v53 = vld [vmem:[#allocation5 + $0x60] sm:$0xff]
    %v54 = vld [vmem:[#allocation5 + $0x68] sm:$0xff]
    %v55 = vld [vmem:[#allocation5 + $0x70] sm:$0xff]
    %v56 = vld [vmem:[#allocation5 + $0x78] sm:$0xff]
    %v57 = vld [vmem:[#allocation5 + $0x80] sm:$0xff]
    %v58 = vld [vmem:[#allocation5 + $0x88] sm:$0xff]
    %v59 = vld [vmem:[#allocation5 + $0x90] sm:$0xff]
    %v60 = vld [vmem:[#allocation5 + $0x98] sm:$0xff]
    %v61 = vld [vmem:[#allocation5 + $0xa0] sm:$0xff]
    %v62 = vld [vmem:[#allocation5 + $0xa8] sm:$0xff]
    %v63 = vld [vmem:[#allocation5 + $0xb0] sm:$0xff]
    %v64 = vld [vmem:[#allocation5 + $0xb8] sm:$0xff]
    %v65 = vld [vmem:[#allocation5 + $0xc0] sm:$0xff]
    %v66 = vld [vmem:[#allocation5 + $0xc8] sm:$0xff]
    %v67 = vld [vmem:[#allocation5 + $0xd0] sm:$0xff]
    %v68 = vld [vmem:[#allocation5 + $0xd8] sm:$0xff]
    %v69 = vld [vmem:[#allocation5 + $0xe0] sm:$0xff]
    %v70 = vld [vmem:[#allocation5 + $0xe8] sm:$0xff]
    %v71 = vld [vmem:[#allocation5 + $0xf0] sm:$0xff]
    %v72 = vld [vmem:[#allocation5 + $0xf8] sm:$0xff]
    %v73 = vpack.c.bf16 %v42, %v41
    %v74 = vpack.c.bf16 %v44, %v43
    %v75 = vpack.c.bf16 %v46, %v45
    %v76 = vpack.c.bf16 %v48, %v47
    %v77 = vpack.c.bf16 %v50, %v49
    %v78 = vpack.c.bf16 %v52, %v51
    %v79 = vpack.c.bf16 %v54, %v53
    %v80 = vpack.c.bf16 %v56, %v55
    %v81 = vpack.c.bf16 %v58, %v57
    %v82 = vpack.c.bf16 %v60, %v59
    %v83 = vpack.c.bf16 %v62, %v61
    %v84 = vpack.c.bf16 %v64, %v63
    %v85 = vpack.c.bf16 %v66, %v65
    %v86 = vpack.c.bf16 %v68, %v67
    %v87 = vpack.c.bf16 %v70, %v69
    %v88 = vpack.c.bf16 %v72, %v71
    %v89 = vunpack.c.l.bf16 %v73
    %v90 = vunpack.c.h.bf16 %v73
    %v91 = vunpack.c.l.bf16 %v74
    %v92 = vunpack.c.h.bf16 %v74
    %v93 = vunpack.c.l.bf16 %v75
    %v94 = vunpack.c.h.bf16 %v75
    %v95 = vunpack.c.l.bf16 %v76
    %v96 = vunpack.c.h.bf16 %v76
    %v97 = vunpack.c.l.bf16 %v77
    %v98 = vunpack.c.h.bf16 %v77
    %v99 = vunpack.c.l.bf16 %v78
    %v100 = vunpack.c.h.bf16 %v78
    %v101 = vunpack.c.l.bf16 %v79
    %v102 = vunpack.c.h.bf16 %v79
    %v103 = vunpack.c.l.bf16 %v80
    %v104 = vunpack.c.h.bf16 %v80
    %v105 = vunpack.c.l.bf16 %v81
    %v106 = vunpack.c.h.bf16 %v81
    %v107 = vunpack.c.l.bf16 %v82
    %v108 = vunpack.c.h.bf16 %v82
    %v109 = vunpack.c.l.bf16 %v83
    %v110 = vunpack.c.h.bf16 %v83
    %v111 = vunpack.c.l.bf16 %v84
    %v112 = vunpack.c.h.bf16 %v84
    %v113 = vunpack.c.l.bf16 %v85
    %v114 = vunpack.c.h.bf16 %v85
    %v115 = vunpack.c.l.bf16 %v86
    %v116 = vunpack.c.h.bf16 %v86
    %v117 = vunpack.c.l.bf16 %v87
    %v118 = vunpack.c.h.bf16 %v87
    %v119 = vunpack.c.l.bf16 %v88
    %v120 = vunpack.c.h.bf16 %v88
    %v121 = vsub.f32 %v41, %v89
    %v122 = vsub.f32 %v42, %v90
    %v123 = vsub.f32 %v43, %v91
    %v124 = vsub.f32 %v44, %v92
    %v125 = vsub.f32 %v45, %v93
    %v126 = vsub.f32 %v46, %v94
    %v127 = vsub.f32 %v47, %v95
    %v128 = vsub.f32 %v48, %v96
    %v129 = vsub.f32 %v49, %v97
    %v130 = vsub.f32 %v50, %v98
    %v131 = vsub.f32 %v51, %v99
    %v132 = vsub.f32 %v52, %v100
    %v133 = vsub.f32 %v53, %v101
    %v134 = vsub.f32 %v54, %v102
    %v135 = vsub.f32 %v55, %v103
    %v136 = vsub.f32 %v56, %v104
    %v137 = vsub.f32 %v57, %v105
    %v138 = vsub.f32 %v58, %v106
    %v139 = vsub.f32 %v59, %v107
    %v140 = vsub.f32 %v60, %v108
    %v141 = vsub.f32 %v61, %v109
    %v142 = vsub.f32 %v62, %v110
    %v143 = vsub.f32 %v63, %v111
    %v144 = vsub.f32 %v64, %v112
    %v145 = vsub.f32 %v65, %v113
    %v146 = vsub.f32 %v66, %v114
    %v147 = vsub.f32 %v67, %v115
    %v148 = vsub.f32 %v68, %v116
    %v149 = vsub.f32 %v69, %v117
    %v150 = vsub.f32 %v70, %v118
    %v151 = vsub.f32 %v71, %v119
    %v152 = vsub.f32 %v72, %v120
    %v153 = vpack.c.bf16 %v122, %v121
    %v154 = vpack.c.bf16 %v124, %v123
    %v155 = vpack.c.bf16 %v126, %v125
    %v156 = vpack.c.bf16 %v128, %v127
    %v157 = vpack.c.bf16 %v130, %v129
    %v158 = vpack.c.bf16 %v132, %v131
    %v159 = vpack.c.bf16 %v134, %v133
    %v160 = vpack.c.bf16 %v136, %v135
    %v161 = vpack.c.bf16 %v138, %v137
    %v162 = vpack.c.bf16 %v140, %v139
    %v163 = vpack.c.bf16 %v142, %v141
    %v164 = vpack.c.bf16 %v144, %v143
    %v165 = vpack.c.bf16 %v146, %v145
    %v166 = vpack.c.bf16 %v148, %v147
    %v167 = vpack.c.bf16 %v150, %v149
    %v168 = vpack.c.bf16 %v152, %v151
    %v169 = vld [vmem:[#allocation2] sm:$0xff]
    %v170 = vld [vmem:[#allocation2 + $0x8] sm:$0xff]
    %v171 = vld [vmem:[#allocation2 + $0x10] sm:$0xff]
    %v172 = vld [vmem:[#allocation2 + $0x18] sm:$0xff]
    %v173 = vld [vmem:[#allocation2 + $0x20] sm:$0xff]
    %v174 = vld [vmem:[#allocation2 + $0x28] sm:$0xff]
    %v175 = vld [vmem:[#allocation2 + $0x30] sm:$0xff]
    %v176 = vld [vmem:[#allocation2 + $0x38] sm:$0xff]
    %v177 = vld [vmem:[#allocation2 + $0x40] sm:$0xff]
    %v178 = vld [vmem:[#allocation2 + $0x48] sm:$0xff]
    %v179 = vld [vmem:[#allocation2 + $0x50] sm:$0xff]
    %v180 = vld [vmem:[#allocation2 + $0x58] sm:$0xff]
    %v181 = vld [vmem:[#allocation2 + $0x60] sm:$0xff]
    %v182 = vld [vmem:[#allocation2 + $0x68] sm:$0xff]
    %v183 = vld [vmem:[#allocation2 + $0x70] sm:$0xff]
    %v184 = vld [vmem:[#allocation2 + $0x78] sm:$0xff]
    %v185 = vld [vmem:[#allocation2 + $0x80] sm:$0xff]
    %v186 = vld [vmem:[#allocation2 + $0x88] sm:$0xff]
    %v187 = vld [vmem:[#allocation2 + $0x90] sm:$0xff]
    %v188 = vld [vmem:[#allocation2 + $0x98] sm:$0xff]
    %v189 = vld [vmem:[#allocation2 + $0xa0] sm:$0xff]
    %v190 = vld [vmem:[#allocation2 + $0xa8] sm:$0xff]
    %v191 = vld [vmem:[#allocation2 + $0xb0] sm:$0xff]
    %v192 = vld [vmem:[#allocation2 + $0xb8] sm:$0xff]
    %v193 = vld [vmem:[#allocation2 + $0xc0] sm:$0xff]
    %v194 = vld [vmem:[#allocation2 + $0xc8] sm:$0xff]
    %v195 = vld [vmem:[#allocation2 + $0xd0] sm:$0xff]
    %v196 = vld [vmem:[#allocation2 + $0xd8] sm:$0xff]
    %v197 = vld [vmem:[#allocation2 + $0xe0] sm:$0xff]
    %v198 = vld [vmem:[#allocation2 + $0xe8] sm:$0xff]
    %v199 = vld [vmem:[#allocation2 + $0xf0] sm:$0xff]
    %v200 = vld [vmem:[#allocation2 + $0xf8] sm:$0xff]
    %v233 = vunpack.c.l.b16 %v169
    %v234 = vunpack.c.h.b16 %v169
    %v235 = vunpack.c.l.b16 %v170
    %v236 = vunpack.c.h.b16 %v170
    %v237 = vunpack.c.l.b16 %v171
    %v238 = vunpack.c.h.b16 %v171
    %v239 = vunpack.c.l.b16 %v172
    %v240 = vunpack.c.h.b16 %v172
    %v241 = vunpack.c.l.b16 %v173
    %v242 = vunpack.c.h.b16 %v173
    %v243 = vunpack.c.l.b16 %v174
    %v244 = vunpack.c.h.b16 %v174
    %v245 = vunpack.c.l.b16 %v175
    %v246 = vunpack.c.h.b16 %v175
    %v247 = vunpack.c.l.b16 %v176
    %v248 = vunpack.c.h.b16 %v176
    %v249 = vunpack.c.l.b16 %v177
    %v250 = vunpack.c.h.b16 %v177
    %v251 = vunpack.c.l.b16 %v178
    %v252 = vunpack.c.h.b16 %v178
    %v253 = vunpack.c.l.b16 %v179
    %v254 = vunpack.c.h.b16 %v179
    %v255 = vunpack.c.l.b16 %v180
    %v256 = vunpack.c.h.b16 %v180
    %v257 = vunpack.c.l.b16 %v181
    %v258 = vunpack.c.h.b16 %v181
    %v259 = vunpack.c.l.b16 %v182
    %v260 = vunpack.c.h.b16 %v182
    %v261 = vunpack.c.l.b16 %v183
    %v262 = vunpack.c.h.b16 %v183
    %v263 = vunpack.c.l.b16 %v184
    %v264 = vunpack.c.h.b16 %v184
    %v265 = vunpack.c.l.b16 %v185
    %v266 = vunpack.c.h.b16 %v185
    %v267 = vunpack.c.l.b16 %v186
    %v268 = vunpack.c.h.b16 %v186
    %v269 = vunpack.c.l.b16 %v187
    %v270 = vunpack.c.h.b16 %v187
    %v271 = vunpack.c.l.b16 %v188
    %v272 = vunpack.c.h.b16 %v188
    %v273 = vunpack.c.l.b16 %v189
    %v274 = vunpack.c.h.b16 %v189
    %v275 = vunpack.c.l.b16 %v190
    %v276 = vunpack.c.h.b16 %v190
    %v277 = vunpack.c.l.b16 %v191
    %v278 = vunpack.c.h.b16 %v191
    %v279 = vunpack.c.l.b16 %v192
    %v280 = vunpack.c.h.b16 %v192
    %v281 = vunpack.c.l.b16 %v193
    %v282 = vunpack.c.h.b16 %v193
    %v283 = vunpack.c.l.b16 %v194
    %v284 = vunpack.c.h.b16 %v194
    %v285 = vunpack.c.l.b16 %v195
    %v286 = vunpack.c.h.b16 %v195
    %v287 = vunpack.c.l.b16 %v196
    %v288 = vunpack.c.h.b16 %v196
    %v289 = vunpack.c.l.b16 %v197
    %v290 = vunpack.c.h.b16 %v197
    %v291 = vunpack.c.l.b16 %v198
    %v292 = vunpack.c.h.b16 %v198
    %v293 = vunpack.c.l.b16 %v199
    %v294 = vunpack.c.h.b16 %v199
    %v295 = vunpack.c.l.b16 %v200
    %v296 = vunpack.c.h.b16 %v200
    %v297 = vpack.c.b16 %v235, %v233
    %v298 = vpack.c.b16 %v236, %v234
    %v299 = vpack.c.b16 %v239, %v237
    %v300 = vpack.c.b16 %v240, %v238
    %v301 = vpack.c.b16 %v243, %v241
    %v302 = vpack.c.b16 %v244, %v242
    %v303 = vpack.c.b16 %v247, %v245
    %v304 = vpack.c.b16 %v248, %v246
    %v305 = vpack.c.b16 %v251, %v249
    %v306 = vpack.c.b16 %v252, %v250
    %v307 = vpack.c.b16 %v255, %v253
    %v308 = vpack.c.b16 %v256, %v254
    %v309 = vpack.c.b16 %v259, %v257
    %v310 = vpack.c.b16 %v260, %v258
    %v311 = vpack.c.b16 %v263, %v261
    %v312 = vpack.c.b16 %v264, %v262
    %v313 = vpack.c.b16 %v267, %v265
    %v314 = vpack.c.b16 %v268, %v266
    %v315 = vpack.c.b16 %v271, %v269
    %v316 = vpack.c.b16 %v272, %v270
    %v317 = vpack.c.b16 %v275, %v273
    %v318 = vpack.c.b16 %v276, %v274
    %v319 = vpack.c.b16 %v279, %v277
    %v320 = vpack.c.b16 %v280, %v278
    %v321 = vpack.c.b16 %v283, %v281
    %v322 = vpack.c.b16 %v284, %v282
    %v323 = vpack.c.b16 %v287, %v285
    %v324 = vpack.c.b16 %v288, %v286
    %v325 = vpack.c.b16 %v291, %v289
    %v326 = vpack.c.b16 %v292, %v290
    %v327 = vpack.c.b16 %v295, %v293
    %v328 = vpack.c.b16 %v296, %v294
    %361 = vmatprep.subr.bf16.mxu0 0
    %362 = vmatpush1.bf16.msra.mxu0 %v153
    %363 = vmatprep.subr.bf16.mxu0 0
    %364 = vmatpush1.bf16.msra.mxu0 %v154
    %365 = vmatprep.subr.bf16.mxu0 0
    %366 = vmatpush1.bf16.msra.mxu0 %v155
    %367 = vmatprep.subr.bf16.mxu0 0
    %368 = vmatpush1.bf16.msra.mxu0 %v156
    %369 = vmatprep.subr.bf16.mxu0 0
    %370 = vmatpush1.bf16.msra.mxu0 %v157
    %371 = vmatprep.subr.bf16.mxu0 0
    %372 = vmatpush1.bf16.msra.mxu0 %v158
    %373 = vmatprep.subr.bf16.mxu0 0
    %374 = vmatpush1.bf16.msra.mxu0 %v159
    %375 = vmatprep.subr.bf16.mxu0 0
    %376 = vmatpush1.bf16.msra.mxu0 %v160
    %377 = vmatprep.subr.bf16.mxu0 0
    %378 = vmatpush1.bf16.msra.mxu0 %v161
    %379 = vmatprep.subr.bf16.mxu0 0
    %380 = vmatpush1.bf16.msra.mxu0 %v162
    %381 = vmatprep.subr.bf16.mxu0 0
    %382 = vmatpush1.bf16.msra.mxu0 %v163
    %383 = vmatprep.subr.bf16.mxu0 0
    %384 = vmatpush1.bf16.msra.mxu0 %v164
    %385 = vmatprep.subr.bf16.mxu0 0
    %386 = vmatpush1.bf16.msra.mxu0 %v165
    %387 = vmatprep.subr.bf16.mxu0 0
    %388 = vmatpush1.bf16.msra.mxu0 %v166
    %389 = vmatprep.subr.bf16.mxu0 0
    %390 = vmatpush1.bf16.msra.mxu0 %v167
    %391 = vmatprep.subr.bf16.mxu0 0
    %392 = vmatpush1.bf16.msra.mxu0 %v168
    %393 = vmatprep.mubr.bf16.mxu0 %v298
    %394 = vmatmul.mubr.bf16.gmra.mrb[0].mxu0 %v297
    %v395 = vpop.f32.mrb[0].mxu0
    %v396 = vadd.f32 0.0, %v395
    %v397 = vpop.f32.mrb[0].mxu0
    %v398 = vpop.f32.mrb[0].mxu0
    %v399 = vadd.f32 0.0, %v398
    %v400 = vpop.f32.mrb[0].mxu0
    %401 = vmatprep.mubr.bf16.mxu0 %v300
    %402 = vmatmul.mubr.bf16.gmra.mrb[0].mxu0 %v299
    %v403 = vpop.f32.mrb[0].mxu0
    %v404 = vadd.f32 0.0, %v403
    %v405 = vpop.f32.mrb[0].mxu0
    %v406 = vpop.f32.mrb[0].mxu0
    %v407 = vadd.f32 0.0, %v406
    %v408 = vpop.f32.mrb[0].mxu0
    %409 = vmatprep.mubr.bf16.mxu0 %v302
    %410 = vmatmul.mubr.bf16.gmra.mrb[0].mxu0 %v301
    %v411 = vpop.f32.mrb[0].mxu0
    %v412 = vadd.f32 0.0, %v411
    %v413 = vpop.f32.mrb[0].mxu0
    %v414 = vpop.f32.mrb[0].mxu0
    %v415 = vadd.f32 0.0, %v414
    %v416 = vpop.f32.mrb[0].mxu0
    %417 = vmatprep.mubr.bf16.mxu0 %v304
    %418 = vmatmul.mubr.bf16.gmra.mrb[0].mxu0 %v303
    %v419 = vpop.f32.mrb[0].mxu0
    %v420 = vadd.f32 0.0, %v419
    %v421 = vpop.f32.mrb[0].mxu0
    %v422 = vpop.f32.mrb[0].mxu0
    %v423 = vadd.f32 0.0, %v422
    %v424 = vpop.f32.mrb[0].mxu0
    %425 = vmatprep.mubr.bf16.mxu0 %v306
    %426 = vmatmul.mubr.bf16.gmra.mrb[0].mxu0 %v305
    %v427 = vpop.f32.mrb[0].mxu0
    %v428 = vadd.f32 0.0, %v427
    %v429 = vpop.f32.mrb[0].mxu0
    %v430 = vpop.f32.mrb[0].mxu0
    %v431 = vadd.f32 0.0, %v430
    %v432 = vpop.f32.mrb[0].mxu0
    %433 = vmatprep.mubr.bf16.mxu0 %v308
    %434 = vmatmul.mubr.bf16.gmra.mrb[0].mxu0 %v307
    %v435 = vpop.f32.mrb[0].mxu0
    %v436 = vadd.f32 0.0, %v435
    %v437 = vpop.f32.mrb[0].mxu0
    %v438 = vpop.f32.mrb[0].mxu0
    %v439 = vadd.f32 0.0, %v438
    %v440 = vpop.f32.mrb[0].mxu0
    %441 = vmatprep.mubr.bf16.mxu0 %v310
    %442 = vmatmul.mubr.bf16.gmra.mrb[0].mxu0 %v309
    %v443 = vpop.f32.mrb[0].mxu0
    %v444 = vadd.f32 0.0, %v443
    %v445 = vpop.f32.mrb[0].mxu0
    %v446 = vpop.f32.mrb[0].mxu0
    %v447 = vadd.f32 0.0, %v446
    %v448 = vpop.f32.mrb[0].mxu0
    %449 = vmatprep.mubr.bf16.mxu0 %v312
    %450 = vmatmul.mubr.bf16.gmra.mrb[0].mxu0 %v311
    %v451 = vpop.f32.mrb[0].mxu0
    %v452 = vadd.f32 0.0, %v451
    %v453 = vpop.f32.mrb[0].mxu0
    %v454 = vpop.f32.mrb[0].mxu0
    %v455 = vadd.f32 0.0, %v454
    %v456 = vpop.f32.mrb[0].mxu0
    %457 = vmatprep.mubr.bf16.mxu0 %v314
    %458 = vmatmul.mubr.bf16.gmra.mrb[0].mxu0 %v313
    %v459 = vpop.f32.mrb[0].mxu0
    %v460 = vadd.f32 0.0, %v459
    %v461 = vpop.f32.mrb[0].mxu0
    %v462 = vpop.f32.mrb[0].mxu0
    %v463 = vadd.f32 0.0, %v462
    %v464 = vpop.f32.mrb[0].mxu0
    %465 = vmatprep.mubr.bf16.mxu0 %v316
    %466 = vmatmul.mubr.bf16.gmra.mrb[0].mxu0 %v315
    %v467 = vpop.f32.mrb[0].mxu0
    %v468 = vadd.f32 0.0, %v467
    %v469 = vpop.f32.mrb[0].mxu0
    %v470 = vpop.f32.mrb[0].mxu0
    %v471 = vadd.f32 0.0, %v470
    %v472 = vpop.f32.mrb[0].mxu0
    %473 = vmatprep.mubr.bf16.mxu0 %v318
    %474 = vmatmul.mubr.bf16.gmra.mrb[0].mxu0 %v317
    %v475 = vpop.f32.mrb[0].mxu0
    %v476 = vadd.f32 0.0, %v475
    %v477 = vpop.f32.mrb[0].mxu0
    %v478 = vpop.f32.mrb[0].mxu0
    %v479 = vadd.f32 0.0, %v478
    %v480 = vpop.f32.mrb[0].mxu0
    %481 = vmatprep.mubr.bf16.mxu0 %v320
    %482 = vmatmul.mubr.bf16.gmra.mrb[0].mxu0 %v319
    %v483 = vpop.f32.mrb[0].mxu0
    %v484 = vadd.f32 0.0, %v483
    %v485 = vpop.f32.mrb[0].mxu0
    %v486 = vpop.f32.mrb[0].mxu0
    %v487 = vadd.f32 0.0, %v486
    %v488 = vpop.f32.mrb[0].mxu0
    %489 = vmatprep.mubr.bf16.mxu0 %v322
    %490 = vmatmul.mubr.bf16.gmra.mrb[0].mxu0 %v321
    %v491 = vpop.f32.mrb[0].mxu0
    %v492 = vadd.f32 0.0, %v491
    %v493 = vpop.f32.mrb[0].mxu0
    %v494 = vpop.f32.mrb[0].mxu0
    %v495 = vadd.f32 0.0, %v494
    %v496 = vpop.f32.mrb[0].mxu0
    %497 = vmatprep.mubr.bf16.mxu0 %v324
    %498 = vmatmul.mubr.bf16.gmra.mrb[0].mxu0 %v323
    %v499 = vpop.f32.mrb[0].mxu0
    %v500 = vadd.f32 0.0, %v499
    %v501 = vpop.f32.mrb[0].mxu0
    %v502 = vpop.f32.mrb[0].mxu0
    %v503 = vadd.f32 0.0, %v502
    %v504 = vpop.f32.mrb[0].mxu0
    %505 = vmatprep.mubr.bf16.mxu0 %v326
    %506 = vmatmul.mubr.bf16.gmra.mrb[0].mxu0 %v325
    %v507 = vpop.f32.mrb[0].mxu0
    %v508 = vadd.f32 0.0, %v507
    %v509 = vpop.f32.mrb[0].mxu0
    %v510 = vpop.f32.mrb[0].mxu0
    %v511 = vadd.f32 0.0, %v510
    %v512 = vpop.f32.mrb[0].mxu0
    %513 = vmatprep.mubr.bf16.mxu0 %v328
    %514 = vmatmul.mubr.bf16.gmra.mrb[0].mxu0 %v327
    %v515 = vpop.f32.mrb[0].mxu0
    %v516 = vadd.f32 0.0, %v515
    %v517 = vpop.f32.mrb[0].mxu0
    %v518 = vpop.f32.mrb[0].mxu0
    %v519 = vadd.f32 0.0, %v518
    %v520 = vpop.f32.mrb[0].mxu0
    %521 = vdwg.mxu0
    %522 = vmatprep.subr.bf16.mxu0 0
    %523 = vmatpush1.bf16.msra.mxu0 %v73
    %524 = vmatprep.subr.bf16.mxu0 0
    %525 = vmatpush1.bf16.msra.mxu0 %v74
    %526 = vmatprep.subr.bf16.mxu0 0
    %527 = vmatpush1.bf16.msra.mxu0 %v75
    %528 = vmatprep.subr.bf16.mxu0 0
    %529 = vmatpush1.bf16.msra.mxu0 %v76
    %530 = vmatprep.subr.bf16.mxu0 0
    %531 = vmatpush1.bf16.msra.mxu0 %v77
    %532 = vmatprep.subr.bf16.mxu0 0
    %533 = vmatpush1.bf16.msra.mxu0 %v78
    %534 = vmatprep.subr.bf16.mxu0 0
    %535 = vmatpush1.bf16.msra.mxu0 %v79
    %536 = vmatprep.subr.bf16.mxu0 0
    %537 = vmatpush1.bf16.msra.mxu0 %v80
    %538 = vmatprep.subr.bf16.mxu0 0
    %539 = vmatpush1.bf16.msra.mxu0 %v81
    %540 = vmatprep.subr.bf16.mxu0 0
    %541 = vmatpush1.bf16.msra.mxu0 %v82
    %542 = vmatprep.subr.bf16.mxu0 0
    %543 = vmatpush1.bf16.msra.mxu0 %v83
    %544 = vmatprep.subr.bf16.mxu0 0
    %545 = vmatpush1.bf16.msra.mxu0 %v84
    %546 = vmatprep.subr.bf16.mxu0 0
    %547 = vmatpush1.bf16.msra.mxu0 %v85
    %548 = vmatprep.subr.bf16.mxu0 0
    %549 = vmatpush1.bf16.msra.mxu0 %v86
    %550 = vmatprep.subr.bf16.mxu0 0
    %551 = vmatpush1.bf16.msra.mxu0 %v87
    %552 = vmatprep.subr.bf16.mxu0 0
    %553 = vmatpush1.bf16.msra.mxu0 %v88
    %554 = vmatprep.mubr.bf16.mxu0 %v298
    %555 = vmatmul.mubr.bf16.gmra.mrb[0].mxu0 %v297
    %v556 = vpop.f32.mrb[0].mxu0
    %v557 = vadd.f32 %v396, %v556
    %v558 = vpop.f32.mrb[0].mxu0
    %v559 = vpop.f32.mrb[0].mxu0
    %v560 = vadd.f32 %v399, %v559
    %v561 = vpop.f32.mrb[0].mxu0
    %562 = vmatprep.mubr.bf16.mxu0 %v300
    %563 = vmatmul.mubr.bf16.gmra.mrb[0].mxu0 %v299
    %v564 = vpop.f32.mrb[0].mxu0
    %v565 = vadd.f32 %v404, %v564
    %v566 = vpop.f32.mrb[0].mxu0
    %v567 = vpop.f32.mrb[0].mxu0
    %v568 = vadd.f32 %v407, %v567
    %v569 = vpop.f32.mrb[0].mxu0
    %570 = vmatprep.mubr.bf16.mxu0 %v302
    %571 = vmatmul.mubr.bf16.gmra.mrb[0].mxu0 %v301
    %v572 = vpop.f32.mrb[0].mxu0
    %v573 = vadd.f32 %v412, %v572
    %v574 = vpop.f32.mrb[0].mxu0
    %v575 = vpop.f32.mrb[0].mxu0
    %v576 = vadd.f32 %v415, %v575
    %v577 = vpop.f32.mrb[0].mxu0
    %578 = vmatprep.mubr.bf16.mxu0 %v304
    %579 = vmatmul.mubr.bf16.gmra.mrb[0].mxu0 %v303
    %v580 = vpop.f32.mrb[0].mxu0
    %v581 = vadd.f32 %v420, %v580
    %v582 = vpop.f32.mrb[0].mxu0
    %v583 = vpop.f32.mrb[0].mxu0
    %v584 = vadd.f32 %v423, %v583
    %v585 = vpop.f32.mrb[0].mxu0
    %586 = vmatprep.mubr.bf16.mxu0 %v306
    %587 = vmatmul.mubr.bf16.gmra.mrb[0].mxu0 %v305
    %v588 = vpop.f32.mrb[0].mxu0
    %v589 = vadd.f32 %v428, %v588
    %v590 = vpop.f32.mrb[0].mxu0
    %v591 = vpop.f32.mrb[0].mxu0
    %v592 = vadd.f32 %v431, %v591
    %v593 = vpop.f32.mrb[0].mxu0
    %594 = vmatprep.mubr.bf16.mxu0 %v308
    %595 = vmatmul.mubr.bf16.gmra.mrb[0].mxu0 %v307
    %v596 = vpop.f32.mrb[0].mxu0
    %v597 = vadd.f32 %v436, %v596
    %v598 = vpop.f32.mrb[0].mxu0
    %v599 = vpop.f32.mrb[0].mxu0
    %v600 = vadd.f32 %v439, %v599
    %v601 = vpop.f32.mrb[0].mxu0
    %602 = vmatprep.mubr.bf16.mxu0 %v310
    %603 = vmatmul.mubr.bf16.gmra.mrb[0].mxu0 %v309
    %v604 = vpop.f32.mrb[0].mxu0
    %v605 = vadd.f32 %v444, %v604
    %v606 = vpop.f32.mrb[0].mxu0
    %v607 = vpop.f32.mrb[0].mxu0
    %v608 = vadd.f32 %v447, %v607
    %v609 = vpop.f32.mrb[0].mxu0
    %610 = vmatprep.mubr.bf16.mxu0 %v312
    %611 = vmatmul.mubr.bf16.gmra.mrb[0].mxu0 %v311
    %v612 = vpop.f32.mrb[0].mxu0
    %v613 = vadd.f32 %v452, %v612
    %v614 = vpop.f32.mrb[0].mxu0
    %v615 = vpop.f32.mrb[0].mxu0
    %v616 = vadd.f32 %v455, %v615
    %v617 = vpop.f32.mrb[0].mxu0
    %618 = vmatprep.mubr.bf16.mxu0 %v314
    %619 = vmatmul.mubr.bf16.gmra.mrb[0].mxu0 %v313
    %v620 = vpop.f32.mrb[0].mxu0
    %v621 = vadd.f32 %v460, %v620
    %v622 = vpop.f32.mrb[0].mxu0
    %v623 = vpop.f32.mrb[0].mxu0
    %v624 = vadd.f32 %v463, %v623
    %v625 = vpop.f32.mrb[0].mxu0
    %626 = vmatprep.mubr.bf16.mxu0 %v316
    %627 = vmatmul.mubr.bf16.gmra.mrb[0].mxu0 %v315
    %v628 = vpop.f32.mrb[0].mxu0
    %v629 = vadd.f32 %v468, %v628
    %v630 = vpop.f32.mrb[0].mxu0
    %v631 = vpop.f32.mrb[0].mxu0
    %v632 = vadd.f32 %v471, %v631
    %v633 = vpop.f32.mrb[0].mxu0
    %634 = vmatprep.mubr.bf16.mxu0 %v318
    %635 = vmatmul.mubr.bf16.gmra.mrb[0].mxu0 %v317
    %v636 = vpop.f32.mrb[0].mxu0
    %v637 = vadd.f32 %v476, %v636
    %v638 = vpop.f32.mrb[0].mxu0
    %v639 = vpop.f32.mrb[0].mxu0
    %v640 = vadd.f32 %v479, %v639
    %v641 = vpop.f32.mrb[0].mxu0
    %642 = vmatprep.mubr.bf16.mxu0 %v320
    %643 = vmatmul.mubr.bf16.gmra.mrb[0].mxu0 %v319
    %v644 = vpop.f32.mrb[0].mxu0
    %v645 = vadd.f32 %v484, %v644
    %v646 = vpop.f32.mrb[0].mxu0
    %v647 = vpop.f32.mrb[0].mxu0
    %v648 = vadd.f32 %v487, %v647
    %v649 = vpop.f32.mrb[0].mxu0
    %650 = vmatprep.mubr.bf16.mxu0 %v322
    %651 = vmatmul.mubr.bf16.gmra.mrb[0].mxu0 %v321
    %v652 = vpop.f32.mrb[0].mxu0
    %v653 = vadd.f32 %v492, %v652
    %v654 = vpop.f32.mrb[0].mxu0
    %v655 = vpop.f32.mrb[0].mxu0
    %v656 = vadd.f32 %v495, %v655
    %v657 = vpop.f32.mrb[0].mxu0
    %658 = vmatprep.mubr.bf16.mxu0 %v324
    %659 = vmatmul.mubr.bf16.gmra.mrb[0].mxu0 %v323
    %v660 = vpop.f32.mrb[0].mxu0
    %v661 = vadd.f32 %v500, %v660
    %v662 = vpop.f32.mrb[0].mxu0
    %v663 = vpop.f32.mrb[0].mxu0
    %v664 = vadd.f32 %v503, %v663
    %v665 = vpop.f32.mrb[0].mxu0
    %666 = vmatprep.mubr.bf16.mxu0 %v326
    %667 = vmatmul.mubr.bf16.gmra.mrb[0].mxu0 %v325
    %v668 = vpop.f32.mrb[0].mxu0
    %v669 = vadd.f32 %v508, %v668
    %v670 = vpop.f32.mrb[0].mxu0
    %v671 = vpop.f32.mrb[0].mxu0
    %v672 = vadd.f32 %v511, %v671
    %v673 = vpop.f32.mrb[0].mxu0
    %674 = vmatprep.mubr.bf16.mxu0 %v328
    %675 = vmatmul.mubr.bf16.gmra.mrb[0].mxu0 %v327
    %v676 = vpop.f32.mrb[0].mxu0
    %v677 = vadd.f32 %v516, %v676
    %v678 = vpop.f32.mrb[0].mxu0
    %v679 = vpop.f32.mrb[0].mxu0
    %v680 = vadd.f32 %v519, %v679
    %v681 = vpop.f32.mrb[0].mxu0
    %682 = vdwg.mxu0
    %v683 = vpack.c.bf16 %v560, %v557
    %v684 = vpack.c.bf16 %v568, %v565
    %v685 = vpack.c.bf16 %v576, %v573
    %v686 = vpack.c.bf16 %v584, %v581
    %v687 = vpack.c.bf16 %v592, %v589
    %v688 = vpack.c.bf16 %v600, %v597
    %v689 = vpack.c.bf16 %v608, %v605
    %v690 = vpack.c.bf16 %v616, %v613
    %v691 = vpack.c.bf16 %v624, %v621
    %v692 = vpack.c.bf16 %v632, %v629
    %v693 = vpack.c.bf16 %v640, %v637
    %v694 = vpack.c.bf16 %v648, %v645
    %v695 = vpack.c.bf16 %v656, %v653
    %v696 = vpack.c.bf16 %v664, %v661
    %v697 = vpack.c.bf16 %v672, %v669
    %v698 = vpack.c.bf16 %v680, %v677
    %v699 = vunpack.c.l.bf16 %v683
    %v700 = vunpack.c.h.bf16 %v683
    %v701 = vunpack.c.l.bf16 %v684
    %v702 = vunpack.c.h.bf16 %v684
    %v703 = vunpack.c.l.bf16 %v685
    %v704 = vunpack.c.h.bf16 %v685
    %v705 = vunpack.c.l.bf16 %v686
    %v706 = vunpack.c.h.bf16 %v686
    %v707 = vunpack.c.l.bf16 %v687
    %v708 = vunpack.c.h.bf16 %v687
    %v709 = vunpack.c.l.bf16 %v688
    %v710 = vunpack.c.h.bf16 %v688
    %v711 = vunpack.c.l.bf16 %v689
    %v712 = vunpack.c.h.bf16 %v689
    %v713 = vunpack.c.l.bf16 %v690
    %v714 = vunpack.c.h.bf16 %v690
    %v715 = vunpack.c.l.bf16 %v691
    %v716 = vunpack.c.h.bf16 %v691
    %v717 = vunpack.c.l.bf16 %v692
    %v718 = vunpack.c.h.bf16 %v692
    %v719 = vunpack.c.l.bf16 %v693
    %v720 = vunpack.c.h.bf16 %v693
    %v721 = vunpack.c.l.bf16 %v694
    %v722 = vunpack.c.h.bf16 %v694
    %v723 = vunpack.c.l.bf16 %v695
    %v724 = vunpack.c.h.bf16 %v695
    %v725 = vunpack.c.l.bf16 %v696
    %v726 = vunpack.c.h.bf16 %v696
    %v727 = vunpack.c.l.bf16 %v697
    %v728 = vunpack.c.h.bf16 %v697
    %v729 = vunpack.c.l.bf16 %v698
    %v730 = vunpack.c.h.bf16 %v698
    %v731 = vsub.f32 %v557, %v699
    %v732 = vsub.f32 %v560, %v700
    %v733 = vsub.f32 %v565, %v701
    %v734 = vsub.f32 %v568, %v702
    %v735 = vsub.f32 %v573, %v703
    %v736 = vsub.f32 %v576, %v704
    %v737 = vsub.f32 %v581, %v705
    %v738 = vsub.f32 %v584, %v706
    %v739 = vsub.f32 %v589, %v707
    %v740 = vsub.f32 %v592, %v708
    %v741 = vsub.f32 %v597, %v709
    %v742 = vsub.f32 %v600, %v710
    %v743 = vsub.f32 %v605, %v711
    %v744 = vsub.f32 %v608, %v712
    %v745 = vsub.f32 %v613, %v713
    %v746 = vsub.f32 %v616, %v714
    %v747 = vsub.f32 %v621, %v715
    %v748 = vsub.f32 %v624, %v716
    %v749 = vsub.f32 %v629, %v717
    %v750 = vsub.f32 %v632, %v718
    %v751 = vsub.f32 %v637, %v719
    %v752 = vsub.f32 %v640, %v720
    %v753 = vsub.f32 %v645, %v721
    %v754 = vsub.f32 %v648, %v722
    %v755 = vsub.f32 %v653, %v723
    %v756 = vsub.f32 %v656, %v724
    %v757 = vsub.f32 %v661, %v725
    %v758 = vsub.f32 %v664, %v726
    %v759 = vsub.f32 %v669, %v727
    %v760 = vsub.f32 %v672, %v728
    %v761 = vsub.f32 %v677, %v729
    %v762 = vsub.f32 %v680, %v730
    %v763 = vpack.c.bf16 %v732, %v731
    %v764 = vpack.c.bf16 %v734, %v733
    %v765 = vpack.c.bf16 %v736, %v735
    %v766 = vpack.c.bf16 %v738, %v737
    %v767 = vpack.c.bf16 %v740, %v739
    %v768 = vpack.c.bf16 %v742, %v741
    %v769 = vpack.c.bf16 %v744, %v743
    %v770 = vpack.c.bf16 %v746, %v745
    %v771 = vpack.c.bf16 %v748, %v747
    %v772 = vpack.c.bf16 %v750, %v749
    %v773 = vpack.c.bf16 %v752, %v751
    %v774 = vpack.c.bf16 %v754, %v753
    %v775 = vpack.c.bf16 %v756, %v755
    %v776 = vpack.c.bf16 %v758, %v757
    %v777 = vpack.c.bf16 %v760, %v759
    %v778 = vpack.c.bf16 %v762, %v761
    %779 = vmatprep.subr.bf16.mxu0 0
    %780 = vmatpush1.bf16.msra.mxu0 %v763
    %781 = vmatprep.subr.bf16.mxu0 0
    %782 = vmatpush1.bf16.msra.mxu0 %v764
    %783 = vmatprep.subr.bf16.mxu0 0
    %784 = vmatpush1.bf16.msra.mxu0 %v765
    %785 = vmatprep.subr.bf16.mxu0 0
    %786 = vmatpush1.bf16.msra.mxu0 %v766
    %787 = vmatprep.subr.bf16.mxu0 0
    %788 = vmatpush1.bf16.msra.mxu0 %v767
    %789 = vmatprep.subr.bf16.mxu0 0
    %790 = vmatpush1.bf16.msra.mxu0 %v768
    %791 = vmatprep.subr.bf16.mxu0 0
    %792 = vmatpush1.bf16.msra.mxu0 %v769
    %793 = vmatprep.subr.bf16.mxu0 0
    %794 = vmatpush1.bf16.msra.mxu0 %v770
    %795 = vmatprep.subr.bf16.mxu0 0
    %796 = vmatpush1.bf16.msra.mxu0 %v771
    %797 = vmatprep.subr.bf16.mxu0 0
    %798 = vmatpush1.bf16.msra.mxu0 %v772
    %799 = vmatprep.subr.bf16.mxu0 0
    %800 = vmatpush1.bf16.msra.mxu0 %v773
    %801 = vmatprep.subr.bf16.mxu0 0
    %802 = vmatpush1.bf16.msra.mxu0 %v774
    %803 = vmatprep.subr.bf16.mxu0 0
    %804 = vmatpush1.bf16.msra.mxu0 %v775
    %805 = vmatprep.subr.bf16.mxu0 0
    %806 = vmatpush1.bf16.msra.mxu0 %v776
    %807 = vmatprep.subr.bf16.mxu0 0
    %808 = vmatpush1.bf16.msra.mxu0 %v777
    %809 = vmatprep.subr.bf16.mxu0 0
    %810 = vmatpush1.bf16.msra.mxu0 %v778
    %811 = vmatprep.mubr.bf16.mxu0 %v298
    %812 = vmatmul.mubr.bf16.gmra.mrb[0].mxu0 %v297
    %v813 = vpop.f32.mrb[0].mxu0
    %v814 = vadd.f32 0.0, %v813
    %v815 = vpop.f32.mrb[0].mxu0
    %v816 = vpop.f32.mrb[0].mxu0
    %v817 = vadd.f32 0.0, %v816
    %v818 = vpop.f32.mrb[0].mxu0
    %819 = vmatprep.mubr.bf16.mxu0 %v300
    %820 = vmatmul.mubr.bf16.gmra.mrb[0].mxu0 %v299
    %v821 = vpop.f32.mrb[0].mxu0
    %v822 = vadd.f32 0.0, %v821
    %v823 = vpop.f32.mrb[0].mxu0
    %v824 = vpop.f32.mrb[0].mxu0
    %v825 = vadd.f32 0.0, %v824
    %v826 = vpop.f32.mrb[0].mxu0
    %827 = vmatprep.mubr.bf16.mxu0 %v302
    %828 = vmatmul.mubr.bf16.gmra.mrb[0].mxu0 %v301
    %v829 = vpop.f32.mrb[0].mxu0
    %v830 = vadd.f32 0.0, %v829
    %v831 = vpop.f32.mrb[0].mxu0
    %v832 = vpop.f32.mrb[0].mxu0
    %v833 = vadd.f32 0.0, %v832
    %v834 = vpop.f32.mrb[0].mxu0
    %835 = vmatprep.mubr.bf16.mxu0 %v304
    %836 = vmatmul.mubr.bf16.gmra.mrb[0].mxu0 %v303
    %v837 = vpop.f32.mrb[0].mxu0
    %v838 = vadd.f32 0.0, %v837
    %v839 = vpop.f32.mrb[0].mxu0
    %v840 = vpop.f32.mrb[0].mxu0
    %v841 = vadd.f32 0.0, %v840
    %v842 = vpop.f32.mrb[0].mxu0
    %843 = vmatprep.mubr.bf16.mxu0 %v306
    %844 = vmatmul.mubr.bf16.gmra.mrb[0].mxu0 %v305
    %v845 = vpop.f32.mrb[0].mxu0
    %v846 = vadd.f32 0.0, %v845
    %v847 = vpop.f32.mrb[0].mxu0
    %v848 = vpop.f32.mrb[0].mxu0
    %v849 = vadd.f32 0.0, %v848
    %v850 = vpop.f32.mrb[0].mxu0
    %851 = vmatprep.mubr.bf16.mxu0 %v308
    %852 = vmatmul.mubr.bf16.gmra.mrb[0].mxu0 %v307
    %v853 = vpop.f32.mrb[0].mxu0
    %v854 = vadd.f32 0.0, %v853
    %v855 = vpop.f32.mrb[0].mxu0
    %v856 = vpop.f32.mrb[0].mxu0
    %v857 = vadd.f32 0.0, %v856
    %v858 = vpop.f32.mrb[0].mxu0
    %859 = vmatprep.mubr.bf16.mxu0 %v310
    %860 = vmatmul.mubr.bf16.gmra.mrb[0].mxu0 %v309
    %v861 = vpop.f32.mrb[0].mxu0
    %v862 = vadd.f32 0.0, %v861
    %v863 = vpop.f32.mrb[0].mxu0
    %v864 = vpop.f32.mrb[0].mxu0
    %v865 = vadd.f32 0.0, %v864
    %v866 = vpop.f32.mrb[0].mxu0
    %867 = vmatprep.mubr.bf16.mxu0 %v312
    %868 = vmatmul.mubr.bf16.gmra.mrb[0].mxu0 %v311
    %v869 = vpop.f32.mrb[0].mxu0
    %v870 = vadd.f32 0.0, %v869
    %v871 = vpop.f32.mrb[0].mxu0
    %v872 = vpop.f32.mrb[0].mxu0
    %v873 = vadd.f32 0.0, %v872
    %v874 = vpop.f32.mrb[0].mxu0
    %875 = vmatprep.mubr.bf16.mxu0 %v314
    %876 = vmatmul.mubr.bf16.gmra.mrb[0].mxu0 %v313
    %v877 = vpop.f32.mrb[0].mxu0
    %v878 = vadd.f32 0.0, %v877
    %v879 = vpop.f32.mrb[0].mxu0
    %v880 = vpop.f32.mrb[0].mxu0
    %v881 = vadd.f32 0.0, %v880
    %v882 = vpop.f32.mrb[0].mxu0
    %883 = vmatprep.mubr.bf16.mxu0 %v316
    %884 = vmatmul.mubr.bf16.gmra.mrb[0].mxu0 %v315
    %v885 = vpop.f32.mrb[0].mxu0
    %v886 = vadd.f32 0.0, %v885
    %v887 = vpop.f32.mrb[0].mxu0
    %v888 = vpop.f32.mrb[0].mxu0
    %v889 = vadd.f32 0.0, %v888
    %v890 = vpop.f32.mrb[0].mxu0
    %891 = vmatprep.mubr.bf16.mxu0 %v318
    %892 = vmatmul.mubr.bf16.gmra.mrb[0].mxu0 %v317
    %v893 = vpop.f32.mrb[0].mxu0
    %v894 = vadd.f32 0.0, %v893
    %v895 = vpop.f32.mrb[0].mxu0
    %v896 = vpop.f32.mrb[0].mxu0
    %v897 = vadd.f32 0.0, %v896
    %v898 = vpop.f32.mrb[0].mxu0
    %899 = vmatprep.mubr.bf16.mxu0 %v320
    %900 = vmatmul.mubr.bf16.gmra.mrb[0].mxu0 %v319
    %v901 = vpop.f32.mrb[0].mxu0
    %v902 = vadd.f32 0.0, %v901
    %v903 = vpop.f32.mrb[0].mxu0
    %v904 = vpop.f32.mrb[0].mxu0
    %v905 = vadd.f32 0.0, %v904
    %v906 = vpop.f32.mrb[0].mxu0
    %907 = vmatprep.mubr.bf16.mxu0 %v322
    %908 = vmatmul.mubr.bf16.gmra.mrb[0].mxu0 %v321
    %v909 = vpop.f32.mrb[0].mxu0
    %v910 = vadd.f32 0.0, %v909
    %v911 = vpop.f32.mrb[0].mxu0
    %v912 = vpop.f32.mrb[0].mxu0
    %v913 = vadd.f32 0.0, %v912
    %v914 = vpop.f32.mrb[0].mxu0
    %915 = vmatprep.mubr.bf16.mxu0 %v324
    %916 = vmatmul.mubr.bf16.gmra.mrb[0].mxu0 %v323
    %v917 = vpop.f32.mrb[0].mxu0
    %v918 = vadd.f32 0.0, %v917
    %v919 = vpop.f32.mrb[0].mxu0
    %v920 = vpop.f32.mrb[0].mxu0
    %v921 = vadd.f32 0.0, %v920
    %v922 = vpop.f32.mrb[0].mxu0
    %923 = vmatprep.mubr.bf16.mxu0 %v326
    %924 = vmatmul.mubr.bf16.gmra.mrb[0].mxu0 %v325
    %v925 = vpop.f32.mrb[0].mxu0
    %v926 = vadd.f32 0.0, %v925
    %v927 = vpop.f32.mrb[0].mxu0
    %v928 = vpop.f32.mrb[0].mxu0
    %v929 = vadd.f32 0.0, %v928
    %v930 = vpop.f32.mrb[0].mxu0
    %931 = vmatprep.mubr.bf16.mxu0 %v328
    %932 = vmatmul.mubr.bf16.gmra.mrb[0].mxu0 %v327
    %v933 = vpop.f32.mrb[0].mxu0
    %v934 = vadd.f32 0.0, %v933
    %v935 = vpop.f32.mrb[0].mxu0
    %v936 = vpop.f32.mrb[0].mxu0
    %v937 = vadd.f32 0.0, %v936
    %v938 = vpop.f32.mrb[0].mxu0
    %939 = vdwg.mxu0
    %940 = vmatprep.subr.bf16.mxu0 0
    %941 = vmatpush1.bf16.msra.mxu0 %v683
    %942 = vmatprep.subr.bf16.mxu0 0
    %943 = vmatpush1.bf16.msra.mxu0 %v684
    %944 = vmatprep.subr.bf16.mxu0 0
    %945 = vmatpush1.bf16.msra.mxu0 %v685
    %946 = vmatprep.subr.bf16.mxu0 0
    %947 = vmatpush1.bf16.msra.mxu0 %v686
    %948 = vmatprep.subr.bf16.mxu0 0
    %949 = vmatpush1.bf16.msra.mxu0 %v687
    %950 = vmatprep.subr.bf16.mxu0 0
    %951 = vmatpush1.bf16.msra.mxu0 %v688
    %952 = vmatprep.subr.bf16.mxu0 0
    %953 = vmatpush1.bf16.msra.mxu0 %v689
    %954 = vmatprep.subr.bf16.mxu0 0
    %955 = vmatpush1.bf16.msra.mxu0 %v690
    %956 = vmatprep.subr.bf16.mxu0 0
    %957 = vmatpush1.bf16.msra.mxu0 %v691
    %958 = vmatprep.subr.bf16.mxu0 0
    %959 = vmatpush1.bf16.msra.mxu0 %v692
    %960 = vmatprep.subr.bf16.mxu0 0
    %961 = vmatpush1.bf16.msra.mxu0 %v693
    %962 = vmatprep.subr.bf16.mxu0 0
    %963 = vmatpush1.bf16.msra.mxu0 %v694
    %964 = vmatprep.subr.bf16.mxu0 0
    %965 = vmatpush1.bf16.msra.mxu0 %v695
    %966 = vmatprep.subr.bf16.mxu0 0
    %967 = vmatpush1.bf16.msra.mxu0 %v696
    %968 = vmatprep.subr.bf16.mxu0 0
    %969 = vmatpush1.bf16.msra.mxu0 %v697
    %970 = vmatprep.subr.bf16.mxu0 0
    %971 = vmatpush1.bf16.msra.mxu0 %v698
    %972 = vmatprep.mubr.bf16.mxu0 %v298
    %973 = vmatmul.mubr.bf16.gmra.mrb[0].mxu0 %v297
    %v974 = vpop.f32.mrb[0].mxu0
    %v975 = vadd.f32 %v814, %v974
    %v976 = vpop.f32.mrb[0].mxu0
    %v977 = vpop.f32.mrb[0].mxu0
    %v978 = vadd.f32 %v817, %v977
    %v979 = vpop.f32.mrb[0].mxu0
    %980 = vmatprep.mubr.bf16.mxu0 %v300
    %981 = vmatmul.mubr.bf16.gmra.mrb[0].mxu0 %v299
    %v982 = vpop.f32.mrb[0].mxu0
    %v983 = vadd.f32 %v822, %v982
    %v984 = vpop.f32.mrb[0].mxu0
    %v985 = vpop.f32.mrb[0].mxu0
    %v986 = vadd.f32 %v825, %v985
    %v987 = vpop.f32.mrb[0].mxu0
    %988 = vmatprep.mubr.bf16.mxu0 %v302
    %989 = vmatmul.mubr.bf16.gmra.mrb[0].mxu0 %v301
    %v990 = vpop.f32.mrb[0].mxu0
    %v991 = vadd.f32 %v830, %v990
    %v992 = vpop.f32.mrb[0].mxu0
    %v993 = vpop.f32.mrb[0].mxu0
    %v994 = vadd.f32 %v833, %v993
    %v995 = vpop.f32.mrb[0].mxu0
    %996 = vmatprep.mubr.bf16.mxu0 %v304
    %997 = vmatmul.mubr.bf16.gmra.mrb[0].mxu0 %v303
    %v998 = vpop.f32.mrb[0].mxu0
    %v999 = vadd.f32 %v838, %v998
    %v1000 = vpop.f32.mrb[0].mxu0
    %v1001 = vpop.f32.mrb[0].mxu0
    %v1002 = vadd.f32 %v841, %v1001
    %v1003 = vpop.f32.mrb[0].mxu0
    %1004 = vmatprep.mubr.bf16.mxu0 %v306
    %1005 = vmatmul.mubr.bf16.gmra.mrb[0].mxu0 %v305
    %v1006 = vpop.f32.mrb[0].mxu0
    %v1007 = vadd.f32 %v846, %v1006
    %v1008 = vpop.f32.mrb[0].mxu0
    %v1009 = vpop.f32.mrb[0].mxu0
    %v1010 = vadd.f32 %v849, %v1009
    %v1011 = vpop.f32.mrb[0].mxu0
    %1012 = vmatprep.mubr.bf16.mxu0 %v308
    %1013 = vmatmul.mubr.bf16.gmra.mrb[0].mxu0 %v307
    %v1014 = vpop.f32.mrb[0].mxu0
    %v1015 = vadd.f32 %v854, %v1014
    %v1016 = vpop.f32.mrb[0].mxu0
    %v1017 = vpop.f32.mrb[0].mxu0
    %v1018 = vadd.f32 %v857, %v1017
    %v1019 = vpop.f32.mrb[0].mxu0
    %1020 = vmatprep.mubr.bf16.mxu0 %v310
    %1021 = vmatmul.mubr.bf16.gmra.mrb[0].mxu0 %v309
    %v1022 = vpop.f32.mrb[0].mxu0
    %v1023 = vadd.f32 %v862, %v1022
    %v1024 = vpop.f32.mrb[0].mxu0
    %v1025 = vpop.f32.mrb[0].mxu0
    %v1026 = vadd.f32 %v865, %v1025
    %v1027 = vpop.f32.mrb[0].mxu0
    %1028 = vmatprep.mubr.bf16.mxu0 %v312
    %1029 = vmatmul.mubr.bf16.gmra.mrb[0].mxu0 %v311
    %v1030 = vpop.f32.mrb[0].mxu0
    %v1031 = vadd.f32 %v870, %v1030
    %v1032 = vpop.f32.mrb[0].mxu0
    %v1033 = vpop.f32.mrb[0].mxu0
    %v1034 = vadd.f32 %v873, %v1033
    %v1035 = vpop.f32.mrb[0].mxu0
    %1036 = vmatprep.mubr.bf16.mxu0 %v314
    %1037 = vmatmul.mubr.bf16.gmra.mrb[0].mxu0 %v313
    %v1038 = vpop.f32.mrb[0].mxu0
    %v1039 = vadd.f32 %v878, %v1038
    %v1040 = vpop.f32.mrb[0].mxu0
    %v1041 = vpop.f32.mrb[0].mxu0
    %v1042 = vadd.f32 %v881, %v1041
    %v1043 = vpop.f32.mrb[0].mxu0
    %1044 = vmatprep.mubr.bf16.mxu0 %v316
    %1045 = vmatmul.mubr.bf16.gmra.mrb[0].mxu0 %v315
    %v1046 = vpop.f32.mrb[0].mxu0
    %v1047 = vadd.f32 %v886, %v1046
    %v1048 = vpop.f32.mrb[0].mxu0
    %v1049 = vpop.f32.mrb[0].mxu0
    %v1050 = vadd.f32 %v889, %v1049
    %v1051 = vpop.f32.mrb[0].mxu0
    %1052 = vmatprep.mubr.bf16.mxu0 %v318
    %1053 = vmatmul.mubr.bf16.gmra.mrb[0].mxu0 %v317
    %v1054 = vpop.f32.mrb[0].mxu0
    %v1055 = vadd.f32 %v894, %v1054
    %v1056 = vpop.f32.mrb[0].mxu0
    %v1057 = vpop.f32.mrb[0].mxu0
    %v1058 = vadd.f32 %v897, %v1057
    %v1059 = vpop.f32.mrb[0].mxu0
    %1060 = vmatprep.mubr.bf16.mxu0 %v320
    %1061 = vmatmul.mubr.bf16.gmra.mrb[0].mxu0 %v319
    %v1062 = vpop.f32.mrb[0].mxu0
    %v1063 = vadd.f32 %v902, %v1062
    %v1064 = vpop.f32.mrb[0].mxu0
    %v1065 = vpop.f32.mrb[0].mxu0
    %v1066 = vadd.f32 %v905, %v1065
    %v1067 = vpop.f32.mrb[0].mxu0
    %1068 = vmatprep.mubr.bf16.mxu0 %v322
    %1069 = vmatmul.mubr.bf16.gmra.mrb[0].mxu0 %v321
    %v1070 = vpop.f32.mrb[0].mxu0
    %v1071 = vadd.f32 %v910, %v1070
    %v1072 = vpop.f32.mrb[0].mxu0
    %v1073 = vpop.f32.mrb[0].mxu0
    %v1074 = vadd.f32 %v913, %v1073
    %v1075 = vpop.f32.mrb[0].mxu0
    %1076 = vmatprep.mubr.bf16.mxu0 %v324
    %1077 = vmatmul.mubr.bf16.gmra.mrb[0].mxu0 %v323
    %v1078 = vpop.f32.mrb[0].mxu0
    %v1079 = vadd.f32 %v918, %v1078
    %v1080 = vpop.f32.mrb[0].mxu0
    %v1081 = vpop.f32.mrb[0].mxu0
    %v1082 = vadd.f32 %v921, %v1081
    %v1083 = vpop.f32.mrb[0].mxu0
    %1084 = vmatprep.mubr.bf16.mxu0 %v326
    %1085 = vmatmul.mubr.bf16.gmra.mrb[0].mxu0 %v325
    %v1086 = vpop.f32.mrb[0].mxu0
    %v1087 = vadd.f32 %v926, %v1086
    %v1088 = vpop.f32.mrb[0].mxu0
    %v1089 = vpop.f32.mrb[0].mxu0
    %v1090 = vadd.f32 %v929, %v1089
    %v1091 = vpop.f32.mrb[0].mxu0
    %1092 = vmatprep.mubr.bf16.mxu0 %v328
    %1093 = vmatmul.mubr.bf16.gmra.mrb[0].mxu0 %v327
    %v1094 = vpop.f32.mrb[0].mxu0
    %v1095 = vadd.f32 %v934, %v1094
    %v1096 = vpop.f32.mrb[0].mxu0
    %v1097 = vpop.f32.mrb[0].mxu0
    %v1098 = vadd.f32 %v937, %v1097
    %v1099 = vpop.f32.mrb[0].mxu0
    %1100 = vdwg.mxu0
    %1101 = vst [vmem:[#allocation7] sm:$0xff] %v975
    %1102 = vst [vmem:[#allocation7 + $0x8] sm:$0xff] %v978
    %1103 = vst [vmem:[#allocation7 + $0x10] sm:$0xff] %v983
    %1104 = vst [vmem:[#allocation7 + $0x18] sm:$0xff] %v986
    %1105 = vst [vmem:[#allocation7 + $0x20] sm:$0xff] %v991
    %1106 = vst [vmem:[#allocation7 + $0x28] sm:$0xff] %v994
    %1107 = vst [vmem:[#allocation7 + $0x30] sm:$0xff] %v999
    %1108 = vst [vmem:[#allocation7 + $0x38] sm:$0xff] %v1002
    %1109 = vst [vmem:[#allocation7 + $0x40] sm:$0xff] %v1007
    %1110 = vst [vmem:[#allocation7 + $0x48] sm:$0xff] %v1010
    %1111 = vst [vmem:[#allocation7 + $0x50] sm:$0xff] %v1015
    %1112 = vst [vmem:[#allocation7 + $0x58] sm:$0xff] %v1018
    %1113 = vst [vmem:[#allocation7 + $0x60] sm:$0xff] %v1023
    %1114 = vst [vmem:[#allocation7 + $0x68] sm:$0xff] %v1026
    %1115 = vst [vmem:[#allocation7 + $0x70] sm:$0xff] %v1031
    %1116 = vst [vmem:[#allocation7 + $0x78] sm:$0xff] %v1034
    %1117 = vst [vmem:[#allocation7 + $0x80] sm:$0xff] %v1039
    %1118 = vst [vmem:[#allocation7 + $0x88] sm:$0xff] %v1042
    %1119 = vst [vmem:[#allocation7 + $0x90] sm:$0xff] %v1047
    %1120 = vst [vmem:[#allocation7 + $0x98] sm:$0xff] %v1050
    %1121 = vst [vmem:[#allocation7 + $0xa0] sm:$0xff] %v1055
    %1122 = vst [vmem:[#allocation7 + $0xa8] sm:$0xff] %v1058
    %1123 = vst [vmem:[#allocation7 + $0xb0] sm:$0xff] %v1063
    %1124 = vst [vmem:[#allocation7 + $0xb8] sm:$0xff] %v1066
    %1125 = vst [vmem:[#allocation7 + $0xc0] sm:$0xff] %v1071
    %1126 = vst [vmem:[#allocation7 + $0xc8] sm:$0xff] %v1074
    %1127 = vst [vmem:[#allocation7 + $0xd0] sm:$0xff] %v1079
    %1128 = vst [vmem:[#allocation7 + $0xd8] sm:$0xff] %v1082
    %1129 = vst [vmem:[#allocation7 + $0xe0] sm:$0xff] %v1087
    %1130 = vst [vmem:[#allocation7 + $0xe8] sm:$0xff] %v1090
    %1131 = vst [vmem:[#allocation7 + $0xf0] sm:$0xff] %v1095
    %1132 = vst [vmem:[#allocation7 + $0xf8] sm:$0xff] %v1098
    // Predicated region
    $region18: #{tpu_custom_call.1} parent=1 // pred_check
      _
    $region19: #{tpu_custom_call.1} parent=1 // pred_check_branch
      %1134 = sbr.rel (0) target = $region21
    $region20: #{tpu_custom_call.1} parent=1 // pred_region
      %s1136 = ssub.s32 4096, 4096
      %1137 = vsyncadd [#allocation4], %s1136
      %s1138 = sshll.u32 [#allocation7], 4
      %s1139 = int_to_ptr.vmem [resolvable:$true] %s1138
      %1144 = dma.vmem_to_hbm [thread:$0]  %s1139, 4096, %s2, [#allocation4], 128, 128, 8
    $region21: #{tpu_custom_call.1} parent=1 // pred_fallthru
      _
    // Predicated region
    $region22: #{tpu_custom_call.1} parent=1 // pred_check
      _
    $region23: #{tpu_custom_call.1} parent=1 // pred_check_branch
      %1146 = sbr.rel (0) target = $region25
    $region24: #{tpu_custom_call.1} parent=1 // pred_region
      %1147 = dma.done [#allocation4], 4096
    $region25: #{tpu_custom_call.1} parent=1 // pred_fallthru
      _
    %1148 = vsyncpa [#allocation3], 1
    %1149 = vsyncpa [#allocation6], 1
    %1150 = vsyncpa [#allocation4], 1

</llo_original>
